<compile_context>
chip_gen: v7x
topology: tpu7x:2x2x1
jax: 0.10.0
libtpu: 0.0.40
codegen_flags: <defaults>
</compile_context>

<pallas_src>
import functools

import jax
import jax.numpy as jnp
from jax.experimental import pallas as pl
from jax.experimental.pallas import tpu as pltpu


def _center_loss_kernel(labels_ref, x_ref, c_ref, out_ref, csel_ref, acc_ref,
                        *, batch_size, num_classes):
    """One batch tile of CenterLoss.

    labels_ref : SMEM (Bp,) int32   -- scalar-prefetched labels (padded batch)
    x_ref      : VMEM (tb, D)       -- current batch tile of features
    c_ref      : VMEM (C, D)        -- full centers table (resident across grid)
    out_ref    : VMEM (1, 1) f32    -- scalar loss
    csel_ref   : VMEM (tb, D) f32   -- gathered per-row centers (scratch)
    acc_ref    : VMEM (1, 1) f32    -- running sum of clipped distances
    """
    i = pl.program_id(0)
    tb = x_ref.shape[0]
    base = i * tb

    @pl.when(i == 0)
    def _init():
        acc_ref[...] = jnp.zeros_like(acc_ref)

    # Gather c[labels[row]] for every row of the tile. Labels come from SMEM,
    # so each iteration is one dynamic-sublane (1, D) row copy — no (B, C)
    # distance matrix, no mask construction, no transposed centers operand.
    for r in range(tb):                      # tb is static -> unrolled at trace
        lbl = labels_ref[base + r]
        csel_ref[pl.ds(r, 1), :] = c_ref[pl.ds(lbl, 1), :].astype(jnp.float32)

    diff = x_ref[...].astype(jnp.float32) - csel_ref[...]
    d = jnp.sum(diff * diff, axis=-1, keepdims=True)          # (tb, 1)
    d = jnp.clip(d, 1e-12, 1e12)                               # clamp on the selected entries

    # Mask out padding rows (batch padded up to a multiple of the tile).
    row = base + jax.lax.broadcasted_iota(jnp.int32, (tb, 1), 0)
    d = jnp.where(row < batch_size, d, 0.0)

    acc_ref[...] += jnp.sum(d, axis=0, keepdims=True)          # (1, 1)

    @pl.when(i == pl.num_programs(0) - 1)
    def _finalize():
        # Clamp-after-mask parity with the PyTorch module: every masked-out
        # (i, j) entry becomes exactly 1e-12 after the clamp, adding
        # (C - 1) * 1e-12 to the per-row mean.
        out_ref[...] = (acc_ref[...] / jnp.float32(batch_size)
                        + jnp.float32((num_classes - 1) * 1e-12))


def center_loss(x, centers, labels, *, block_b=128):
    """CenterLoss forward matching the PyTorch module.

    x: (B, D) float, centers: (C, D) float, labels: (B,) int -> scalar f32.
    """
    if x.ndim == 1:                          # mirrors the module's unsqueeze
        x = x[:, None]
    B, D = x.shape
    C = centers.shape[0]

    # Batch tile: power-of-two, sublane-aligned (>=8), capped at block_b.
    tb = min(block_b, max(8, pl.next_power_of_2(B)))
    Bp = pl.cdiv(B, tb) * tb
    if Bp != B:
        x = jnp.pad(x, ((0, Bp - B), (0, 0)))
        labels = jnp.pad(labels, (0, Bp - B))
    labels = labels.astype(jnp.int32)

    kernel = functools.partial(_center_loss_kernel,
                               batch_size=B, num_classes=C)

    out = pl.pallas_call(
        kernel,
        out_shape=jax.ShapeDtypeStruct((1, 1), jnp.float32),
        grid_spec=pltpu.PrefetchScalarGridSpec(
            num_scalar_prefetch=1,                 # labels -> SMEM
            grid=(Bp // tb,),
            in_specs=[
                pl.BlockSpec((tb, D), lambda i, lbl: (i, 0)),   # x batch tile
                pl.BlockSpec((C, D), lambda i, lbl: (0, 0)),    # centers, resident
            ],
            out_specs=pl.BlockSpec((1, 1), lambda i, lbl: (0, 0)),
            scratch_shapes=[
                pltpu.VMEM((tb, D), jnp.float32),   # gathered per-row centers
                pltpu.VMEM((1, 1), jnp.float32),    # running sum accumulator
            ],
        ),
        compiler_params=pltpu.CompilerParams(
            dimension_semantics=("arbitrary",)),    # scalar-reduction axis
    )(labels, x, centers)
    return out[0, 0]


def center_loss_ref(x, centers, labels):
    """Pure-JAX reference mirroring the PyTorch forward exactly."""
    B = x.shape[0]
    C = centers.shape[0]
    distmat = (
        jnp.sum(x**2, axis=1, keepdims=True)
        + jnp.sum(centers**2, axis=1, keepdims=True).T
        - 2.0 * x @ centers.T
    )
    mask = (labels[:, None].astype(jnp.int32)
            == jnp.arange(C, dtype=jnp.int32)[None, :])
    dist = jnp.clip(distmat * mask.astype(jnp.float32), 1e-12, 1e12)
    return jnp.sum(dist) / B


if __name__ == "__main__":
    num_classes = 4
    feat_dim = 128
    batch = 8

    key = jax.random.PRNGKey(0)
    k_centers, k_x, k_lab = jax.random.split(key, 3)

    # Deterministic parameter init (module's nn.Parameter(torch.randn(C, D)))
    centers = jax.random.normal(k_centers, (num_classes, feat_dim), dtype=jnp.float32)
    x = jax.random.normal(k_x, (batch, feat_dim), dtype=jnp.float32)
    labels = jax.random.randint(k_lab, (batch,), 0, num_classes, dtype=jnp.int32)

    loss = jax.block_until_ready(center_loss(x, centers, labels))
    loss_ref = jax.block_until_ready(center_loss_ref(x, centers, labels))

    assert jnp.allclose(loss, loss_ref, rtol=1e-5, atol=1e-4), (loss, loss_ref)
    print("KERNEL_OK")
</pallas_src>

<mosaic_0001>
module attributes {stable_mosaic.version = 11 : i64} {
  func.func @_center_loss_kernel(%arg0: i32, %arg1: memref<8xi32, #tpu.memory_space<smem>>, %arg2: memref<8x128xf32, #tpu.memory_space<vmem>>, %arg3: memref<4x128xf32, #tpu.memory_space<vmem>>, %arg4: memref<1x1xf32, #tpu.memory_space<vmem>>, %arg5: memref<8x128xf32, #tpu.memory_space<vmem>>, %arg6: memref<1x1xf32, #tpu.memory_space<vmem>>) attributes {dimension_semantics = [#tpu.dimension_semantics<arbitrary>], iteration_bounds = array<i64: 1>, scalar_prefetch = 1 : i64, scratch_operands = 2 : i64, tpu.core_type = #tpu.core_type<tc>, window_params = [{transform_indices = @transform_0, window_bounds = array<i64: 8, 128>}, {pipeline_mode = #tpu.pipeline_mode<synchronous>, transform_indices = @transform_1, window_bounds = array<i64: 4, 128>}, {pipeline_mode = #tpu.pipeline_mode<synchronous>, transform_indices = @transform_2, window_bounds = array<i64: 1, 1>}]} {
    %c8_i32 = arith.constant 8 : i32
    %0 = arith.muli %arg0, %c8_i32 : i32
    %c0_i32 = arith.constant 0 : i32
    %1 = arith.cmpi eq, %arg0, %c0_i32 : i32
    %2 = arith.extui %1 : i1 to i32
    %c0_i32_0 = arith.constant 0 : i32
    %3 = arith.cmpi ne, %2, %c0_i32_0 : i32
    scf.if %3 {
      %cst_33 = arith.constant 0.000000e+00 : f32
      %77 = vector.broadcast %cst_33 : f32 to vector<1x1xf32>
      %c0_34 = arith.constant 0 : index
      %c0_35 = arith.constant 0 : index
      %78 = vector.load %arg6[%c0_34, %c0_35] : memref<1x1xf32, #tpu.memory_space<vmem>>, vector<1x1xf32>
      tpu.vector_store %arg6[%c0_34, %c0_35], %77 {strides = array<i32>} : memref<1x1xf32, #tpu.memory_space<vmem>>, vector<1x1xf32>,
    } else {
    }
    %c0_i32_1 = arith.constant 0 : i32
    %4 = arith.addi %0, %c0_i32_1 : i32
    %5 = arith.index_cast %4 : i32 to index
    %6 = memref.load %arg1[%5] : memref<8xi32, #tpu.memory_space<smem>>
    %7 = arith.index_cast %6 : i32 to index
    %c0 = arith.constant 0 : index
    %8 = vector.load %arg3[%7, %c0] : memref<4x128xf32, #tpu.memory_space<vmem>>, vector<1x128xf32>
    %c0_2 = arith.constant 0 : index
    %c0_3 = arith.constant 0 : index
    %9 = vector.load %arg5[%c0_2, %c0_3] : memref<8x128xf32, #tpu.memory_space<vmem>>, vector<1x128xf32>
    tpu.vector_store %arg5[%c0_2, %c0_3], %8 {strides = array<i32>} : memref<8x128xf32, #tpu.memory_space<vmem>>, vector<1x128xf32>,
    %c1_i32 = arith.constant 1 : i32
    %10 = arith.addi %0, %c1_i32 : i32
    %11 = arith.index_cast %10 : i32 to index
    %12 = memref.load %arg1[%11] : memref<8xi32, #tpu.memory_space<smem>>
    %13 = arith.index_cast %12 : i32 to index
    %c0_4 = arith.constant 0 : index
    %14 = vector.load %arg3[%13, %c0_4] : memref<4x128xf32, #tpu.memory_space<vmem>>, vector<1x128xf32>
    %c1 = arith.constant 1 : index
    %c0_5 = arith.constant 0 : index
    %15 = vector.load %arg5[%c1, %c0_5] : memref<8x128xf32, #tpu.memory_space<vmem>>, vector<1x128xf32>
    tpu.vector_store %arg5[%c1, %c0_5], %14 {strides = array<i32>} : memref<8x128xf32, #tpu.memory_space<vmem>>, vector<1x128xf32>,
    %c2_i32 = arith.constant 2 : i32
    %16 = arith.addi %0, %c2_i32 : i32
    %17 = arith.index_cast %16 : i32 to index
    %18 = memref.load %arg1[%17] : memref<8xi32, #tpu.memory_space<smem>>
    %19 = arith.index_cast %18 : i32 to index
    %c0_6 = arith.constant 0 : index
    %20 = vector.load %arg3[%19, %c0_6] : memref<4x128xf32, #tpu.memory_space<vmem>>, vector<1x128xf32>
    %c2 = arith.constant 2 : index
    %c0_7 = arith.constant 0 : index
    %21 = vector.load %arg5[%c2, %c0_7] : memref<8x128xf32, #tpu.memory_space<vmem>>, vector<1x128xf32>
    tpu.vector_store %arg5[%c2, %c0_7], %20 {strides = array<i32>} : memref<8x128xf32, #tpu.memory_space<vmem>>, vector<1x128xf32>,
    %c3_i32 = arith.constant 3 : i32
    %22 = arith.addi %0, %c3_i32 : i32
    %23 = arith.index_cast %22 : i32 to index
    %24 = memref.load %arg1[%23] : memref<8xi32, #tpu.memory_space<smem>>
    %25 = arith.index_cast %24 : i32 to index
    %c0_8 = arith.constant 0 : index
    %26 = vector.load %arg3[%25, %c0_8] : memref<4x128xf32, #tpu.memory_space<vmem>>, vector<1x128xf32>
    %c3 = arith.constant 3 : index
    %c0_9 = arith.constant 0 : index
    %27 = vector.load %arg5[%c3, %c0_9] : memref<8x128xf32, #tpu.memory_space<vmem>>, vector<1x128xf32>
    tpu.vector_store %arg5[%c3, %c0_9], %26 {strides = array<i32>} : memref<8x128xf32, #tpu.memory_space<vmem>>, vector<1x128xf32>,
    %c4_i32 = arith.constant 4 : i32
    %28 = arith.addi %0, %c4_i32 : i32
    %29 = arith.index_cast %28 : i32 to index
    %30 = memref.load %arg1[%29] : memref<8xi32, #tpu.memory_space<smem>>
    %31 = arith.index_cast %30 : i32 to index
    %c0_10 = arith.constant 0 : index
    %32 = vector.load %arg3[%31, %c0_10] : memref<4x128xf32, #tpu.memory_space<vmem>>, vector<1x128xf32>
    %c4 = arith.constant 4 : index
    %c0_11 = arith.constant 0 : index
    %33 = vector.load %arg5[%c4, %c0_11] : memref<8x128xf32, #tpu.memory_space<vmem>>, vector<1x128xf32>
    tpu.vector_store %arg5[%c4, %c0_11], %32 {strides = array<i32>} : memref<8x128xf32, #tpu.memory_space<vmem>>, vector<1x128xf32>,
    %c5_i32 = arith.constant 5 : i32
    %34 = arith.addi %0, %c5_i32 : i32
    %35 = arith.index_cast %34 : i32 to index
    %36 = memref.load %arg1[%35] : memref<8xi32, #tpu.memory_space<smem>>
    %37 = arith.index_cast %36 : i32 to index
    %c0_12 = arith.constant 0 : index
    %38 = vector.load %arg3[%37, %c0_12] : memref<4x128xf32, #tpu.memory_space<vmem>>, vector<1x128xf32>
    %c5 = arith.constant 5 : index
    %c0_13 = arith.constant 0 : index
    %39 = vector.load %arg5[%c5, %c0_13] : memref<8x128xf32, #tpu.memory_space<vmem>>, vector<1x128xf32>
    tpu.vector_store %arg5[%c5, %c0_13], %38 {strides = array<i32>} : memref<8x128xf32, #tpu.memory_space<vmem>>, vector<1x128xf32>,
    %c6_i32 = arith.constant 6 : i32
    %40 = arith.addi %0, %c6_i32 : i32
    %41 = arith.index_cast %40 : i32 to index
    %42 = memref.load %arg1[%41] : memref<8xi32, #tpu.memory_space<smem>>
    %43 = arith.index_cast %42 : i32 to index
    %c0_14 = arith.constant 0 : index
    %44 = vector.load %arg3[%43, %c0_14] : memref<4x128xf32, #tpu.memory_space<vmem>>, vector<1x128xf32>
    %c6 = arith.constant 6 : index
    %c0_15 = arith.constant 0 : index
    %45 = vector.load %arg5[%c6, %c0_15] : memref<8x128xf32, #tpu.memory_space<vmem>>, vector<1x128xf32>
    tpu.vector_store %arg5[%c6, %c0_15], %44 {strides = array<i32>} : memref<8x128xf32, #tpu.memory_space<vmem>>, vector<1x128xf32>,
    %c7_i32 = arith.constant 7 : i32
    %46 = arith.addi %0, %c7_i32 : i32
    %47 = arith.index_cast %46 : i32 to index
    %48 = memref.load %arg1[%47] : memref<8xi32, #tpu.memory_space<smem>>
    %49 = arith.index_cast %48 : i32 to index
    %c0_16 = arith.constant 0 : index
    %50 = vector.load %arg3[%49, %c0_16] : memref<4x128xf32, #tpu.memory_space<vmem>>, vector<1x128xf32>
    %c7 = arith.constant 7 : index
    %c0_17 = arith.constant 0 : index
    %51 = vector.load %arg5[%c7, %c0_17] : memref<8x128xf32, #tpu.memory_space<vmem>>, vector<1x128xf32>
    tpu.vector_store %arg5[%c7, %c0_17], %50 {strides = array<i32>} : memref<8x128xf32, #tpu.memory_space<vmem>>, vector<1x128xf32>,
    %c0_18 = arith.constant 0 : index
    %c0_19 = arith.constant 0 : index
    %52 = vector.load %arg2[%c0_18, %c0_19] : memref<8x128xf32, #tpu.memory_space<vmem>>, vector<8x128xf32>
    %c0_20 = arith.constant 0 : index
    %c0_21 = arith.constant 0 : index
    %53 = vector.load %arg5[%c0_20, %c0_21] : memref<8x128xf32, #tpu.memory_space<vmem>>, vector<8x128xf32>
    %54 = arith.subf %52, %53 : vector<8x128xf32>
    %55 = arith.mulf %54, %54 : vector<8x128xf32>
    %cst = arith.constant dense<0.000000e+00> : vector<8xf32>
    %56 = vector.multi_reduction <add>, %55, %cst [1] : vector<8x128xf32> to vector<8xf32>
    %57 = vector.shape_cast %56 : vector<8xf32> to vector<8x1xf32>
    %cst_22 = arith.constant 9.99999996E-13 : f32
    %cst_23 = arith.constant 9.99999995E+11 : f32
    %58 = vector.broadcast %cst_22 : f32 to vector<8x1xf32>
    %59 = arith.maximumf %58, %57 : vector<8x1xf32>
    %60 = vector.broadcast %cst_23 : f32 to vector<8x1xf32>
    %61 = arith.minimumf %60, %59 : vector<8x1xf32>
    %62 = tpu.iota {dimensions = array<i32: 0>} : vector<8x1xi32>
    %63 = vector.broadcast %0 : i32 to vector<8x1xi32>
    %64 = arith.addi %63, %62 : vector<8x1xi32>
    %c8_i32_24 = arith.constant 8 : i32
    %65 = vector.broadcast %c8_i32_24 : i32 to vector<8x1xi32>
    %66 = arith.cmpi slt, %64, %65 : vector<8x1xi32>
    %cst_25 = arith.constant 0.000000e+00 : f32
    %67 = vector.broadcast %cst_25 : f32 to vector<8x1xf32>
    %68 = arith.select %66, %61, %67 : vector<8x1xi1>, vector<8x1xf32>
    %c0_26 = arith.constant 0 : index
    %c0_27 = arith.constant 0 : index
    %69 = vector.load %arg6[%c0_26, %c0_27] : memref<1x1xf32, #tpu.memory_space<vmem>>, vector<1x1xf32>
    %cst_28 = arith.constant dense<0.000000e+00> : vector<1xf32>
    %70 = vector.multi_reduction <add>, %68, %cst_28 [0] : vector<8x1xf32> to vector<1xf32>
    %71 = vector.shape_cast %70 : vector<1xf32> to vector<1x1xf32>
    %72 = arith.addf %69, %71 : vector<1x1xf32>
    %c0_29 = arith.constant 0 : index
    %c0_30 = arith.constant 0 : index
    %73 = vector.load %arg6[%c0_29, %c0_30] : memref<1x1xf32, #tpu.memory_space<vmem>>, vector<1x1xf32>
    tpu.vector_store %arg6[%c0_29, %c0_30], %72 {strides = array<i32>} : memref<1x1xf32, #tpu.memory_space<vmem>>, vector<1x1xf32>,
    %c0_i32_31 = arith.constant 0 : i32
    %74 = arith.cmpi eq, %arg0, %c0_i32_31 : i32
    %75 = arith.extui %74 : i1 to i32
    %c0_i32_32 = arith.constant 0 : i32
    %76 = arith.cmpi ne, %75, %c0_i32_32 : i32
    scf.if %76 {
      %c0_33 = arith.constant 0 : index
      %c0_34 = arith.constant 0 : index
      %77 = vector.load %arg6[%c0_33, %c0_34] : memref<1x1xf32, #tpu.memory_space<vmem>>, vector<1x1xf32>
      %cst_35 = arith.constant 8.000000e+00 : f32
      %78 = vector.broadcast %cst_35 : f32 to vector<1x1xf32>
      %79 = arith.divf %77, %78 : vector<1x1xf32>
      %cst_36 = arith.constant 3.000000e-12 : f32
      %80 = vector.broadcast %cst_36 : f32 to vector<1x1xf32>
      %81 = arith.addf %79, %80 : vector<1x1xf32>
      %c0_37 = arith.constant 0 : index
      %c0_38 = arith.constant 0 : index
      %82 = vector.load %arg4[%c0_37, %c0_38] : memref<1x1xf32, #tpu.memory_space<vmem>>, vector<1x1xf32>
      tpu.vector_store %arg4[%c0_37, %c0_38], %81 {strides = array<i32>} : memref<1x1xf32, #tpu.memory_space<vmem>>, vector<1x1xf32>,
    } else {
    }
    return
  }
  func.func @transform_0(%arg0: i32, %arg1: memref<8xi32, #tpu.memory_space<smem>>) -> (i32, i32) {
    %c0_i32 = arith.constant 0 : i32
    %c0_i32_0 = arith.constant 0 : i32
    return %arg0, %c0_i32 : i32, i32
  }
  func.func @transform_1(%arg0: i32, %arg1: memref<8xi32, #tpu.memory_space<smem>>) -> (i32, i32) {
    %c0_i32 = arith.constant 0 : i32
    %c0_i32_0 = arith.constant 0 : i32
    %c0_i32_1 = arith.constant 0 : i32
    return %c0_i32, %c0_i32_0 : i32, i32
  }
  func.func @transform_2(%arg0: i32, %arg1: memref<8xi32, #tpu.memory_space<smem>>) -> (i32, i32) {
    %c0_i32 = arith.constant 0 : i32
    %c0_i32_0 = arith.constant 0 : i32
    %c0_i32_1 = arith.constant 0 : i32
    return %c0_i32, %c0_i32_0 : i32, i32
  }
}

</mosaic_0001>

<llo_original>
// kernel: tpu_custom_call.1
$region0: #{tpu_custom_call.1}
  #allocation0 [shape = 'u32[]', space=smem, size = 0x4, offset = 0x4, fixed_abs, tag = 'smem constant byte address 0x4 - core index']
  #allocation1 [shape = 'u32[144,128]{1,0:T(1,128)}', space=vmem, size = 0x12000, scoped, tag = 'internal scratch']
  #allocation2 [shape = 'f32[8,128]{1,0:T(8,128)}', space=vmem, size = 0x1000, scoped, tag = 'scratch operand']
  #allocation3 [shape = 'f32[1,1]{1,0:T(1,128)}', space=vmem, size = 0x200, scoped, tag = 'scratch operand']
  #allocation4 [shape = 's32[1]{0}', space=sflag, size = 0x4, scoped, tag = 'scoped memory for tpu_custom_call.1']
  #allocation5 [shape = 'u8[512]{0}', space=smem, size = 0x200, scoped, tag = 'prefetched SMEM operand 0']
  %s0 = inlined_call_operand.hbm [shape: s32[8], index: 0, kind: input, shape index: {}]
  %s1 = inlined_call_operand.hbm [shape: f32[8,128], index: 1, kind: input, shape index: {}]
  %s2 = inlined_call_operand.vmem [shape: f32[4,128], index: 2, kind: input, shape index: {}]
  %s3 = inlined_call_operand.hbm [shape: f32[1,1], index: 3, kind: output, shape index: {}]
  %s4 = sld [smem:[#allocation0]]
  $region30: #{tpu_custom_call.1} parent=0
    _
  %s6 = ssub.s32 1, %s4
  %s7 = scalar_select 0, %s6, %s4
  %9 = dma.hbm_to_smem %s0, 16, [#allocation5], [#allocation4]
  %10 = dma.done [#allocation4], 16
  %11 = sfence
  $region1: #{tpu_custom_call.1} parent=0
    #allocation6 [shape = 'u8[4096]{0}', space=vmem, size = 0x1000, scoped, tag = 'input window, operand 1, single buffered']
    #allocation7 [shape = 's32[1]{0}', space=sflag, size = 0x4, scoped, tag = 'scoped memory for tpu_custom_call.1']
    #allocation8 [shape = 's32[1]{0}', space=sflag, size = 0x4, scoped, tag = 'scoped memory for tpu_custom_call.1']
    #allocation9 [shape = 'u8[512]{0}', space=vmem, size = 0x400, scoped, tag = 'output window, operand 0, single buffered']
    %12 = vsyncpa [#allocation7], 0
    %13 = vsyncpa [#allocation8], 0
    // Predicated region
    $region2: #{tpu_custom_call.1} parent=1 // pred_check
      _
    $region3: #{tpu_custom_call.1} parent=1 // pred_check_branch
      %15 = sbr.rel (0) target = $region5
    $region4: #{tpu_custom_call.1} parent=1 // pred_region
      %s17 = ssub.s32 128, 128
      %18 = vsyncadd [#allocation7], %s17
      %s20 = sshll.u32 [#allocation6], 4
      %s21 = int_to_ptr.vmem [resolvable:$true] %s20
      %23 = dma.hbm_to_vmem [thread:$0]  %s1, 128, %s21, [#allocation7]
    $region5: #{tpu_custom_call.1} parent=1 // pred_fallthru
      _
    // Predicated region
    $region6: #{tpu_custom_call.1} parent=1 // pred_check
      _
    $region7: #{tpu_custom_call.1} parent=1 // pred_check_branch
      %25 = sbr.rel (0) target = $region9
    $region8: #{tpu_custom_call.1} parent=1 // pred_region
      _
    $region9: #{tpu_custom_call.1} parent=1 // pred_fallthru
      _
    // Predicated region
    $region10: #{tpu_custom_call.1} parent=1 // pred_check
      _
    $region11: #{tpu_custom_call.1} parent=1 // pred_check_branch
      %27 = sbr.rel (0) target = $region13
    $region12: #{tpu_custom_call.1} parent=1 // pred_region
      %28 = dma.done [#allocation7], 128
    $region13: #{tpu_custom_call.1} parent=1 // pred_fallthru
      _
    %s29 = smul.u32 0, 8
    %p30 = scmp.eq.s32.totalorder 0, 0
    // Predicated region
    $region14: #{tpu_custom_call.1} parent=1 // pred_check
      %p31 = pneg %p30
    $region15: #{tpu_custom_call.1} parent=1 // pred_check_branch
      %33 = sbr.rel (%p31) target = $region17
    $region16: #{tpu_custom_call.1} parent=1 // pred_region
      %vm34 = vcmask 0
      %35 = vst.msk [vmem:[#allocation3] sm:$0x1] %vm34, 0.0
    $region17: #{tpu_custom_call.1} parent=1 // pred_fallthru
      _
    %s36 = sld [smem:[#allocation5 + %s29]]
    %s37 = scalar_lea.vmem %s2, %s36
    %v38 = vld [vmem:[%s37] sm:$0x1]
    %39 = vst [vmem:[#allocation2] sm:$0x1] %v38
    %s40 = sadd.s32 %s29, 1
    %s41 = sld [smem:[#allocation5 + %s40]]
    %s42 = scalar_lea.vmem %s2, %s41
    %v43 = vld [vmem:[%s42] sm:$0x1]
    %44 = vst [vmem:[#allocation2 + $0x1] sm:$0x1] %v43
    %s45 = sadd.s32 %s29, 2
    %s46 = sld [smem:[#allocation5 + %s45]]
    %s47 = scalar_lea.vmem %s2, %s46
    %v48 = vld [vmem:[%s47] sm:$0x1]
    %49 = vst [vmem:[#allocation2 + $0x2] sm:$0x1] %v48
    %s50 = sadd.s32 %s29, 3
    %s51 = sld [smem:[#allocation5 + %s50]]
    %s52 = scalar_lea.vmem %s2, %s51
    %v53 = vld [vmem:[%s52] sm:$0x1]
    %54 = vst [vmem:[#allocation2 + $0x3] sm:$0x1] %v53
    %s55 = sadd.s32 %s29, 4
    %s56 = sld [smem:[#allocation5 + %s55]]
    %s57 = scalar_lea.vmem %s2, %s56
    %v58 = vld [vmem:[%s57] sm:$0x1]
    %59 = vst [vmem:[#allocation2 + $0x4] sm:$0x1] %v58
    %s60 = sadd.s32 %s29, 5
    %s61 = sld [smem:[#allocation5 + %s60]]
    %s62 = scalar_lea.vmem %s2, %s61
    %v63 = vld [vmem:[%s62] sm:$0x1]
    %64 = vst [vmem:[#allocation2 + $0x5] sm:$0x1] %v63
    %s65 = sadd.s32 %s29, 6
    %s66 = sld [smem:[#allocation5 + %s65]]
    %s67 = scalar_lea.vmem %s2, %s66
    %v68 = vld [vmem:[%s67] sm:$0x1]
    %69 = vst [vmem:[#allocation2 + $0x6] sm:$0x1] %v68
    %s70 = sadd.s32 %s29, 7
    %s71 = sld [smem:[#allocation5 + %s70]]
    %s72 = scalar_lea.vmem %s2, %s71
    %v73 = vld [vmem:[%s72] sm:$0x1]
    %74 = vst [vmem:[#allocation2 + $0x7] sm:$0x1] %v73
    %v75 = vld [vmem:[#allocation6] sm:$0xff]
    %v76 = vld [vmem:[#allocation2] sm:$0xff]
    %v77 = vsub.f32 %v75, %v76
    %v78 = vmul.f32 %v77, %v77
    %79 = vadd.xlane.f32.xlu0 %v78
    %v80 = vpop.xlane.xlu0 %79
    %v81 = vmax.f32 %v80, 1e-12
    %v82 = vmin.f32 %v81, 1e+12
    %v83 = vlaneseq
    %v84 = vshrl.u32 %v83, 7
    %v85 = vstv %s29
    %v86 = vadd.s32 %v85, %v84
    %vm87 = vcmp.lt.s32.totalorder %v86, 8
    %v88 = vsel %vm87, %v82, 0.0
    %v89 = vld [vmem:[#allocation3] sm:$0x1]
    %v90 = vrot.slane %v88, 4
    %v91 = vadd.f32 %v88, %v90
    %v92 = vrot.slane %v91, 2
    %v93 = vadd.f32 %v91, %v92
    %v94 = vrot.slane %v93, 1
    %v95 = vadd.f32 %v93, %v94
    %v96 = vadd.f32 %v89, %v95
    %vm97 = vcmask 0
    %98 = vst.msk [vmem:[#allocation3] sm:$0x1] %vm97, %v96
    // Predicated region
    $region18: #{tpu_custom_call.1} parent=1 // pred_check
      %p99 = pneg %p30
    $region19: #{tpu_custom_call.1} parent=1 // pred_check_branch
      %101 = sbr.rel (%p99) target = $region21
    $region20: #{tpu_custom_call.1} parent=1 // pred_region
      %v102 = vld [vmem:[#allocation3] sm:$0x1]
      %v103 = vrcp.pop 8.0
      %v104 = vmul.f32 %v102, %v103
      %v105 = vadd.f32 %v104, 3e-12
      %106 = vst.msk [vmem:[#allocation9] sm:$0x1] %vm97, %v105
    $region21: #{tpu_custom_call.1} parent=1 // pred_fallthru
      _
    // Predicated region
    $region22: #{tpu_custom_call.1} parent=1 // pred_check
      _
    $region23: #{tpu_custom_call.1} parent=1 // pred_check_branch
      %108 = sbr.rel (0) target = $region25
    $region24: #{tpu_custom_call.1} parent=1 // pred_region
      %s110 = ssub.s32 16, 16
      %111 = vsyncadd [#allocation8], %s110
      %s113 = sshll.u32 [#allocation9], 4
      %s114 = int_to_ptr.vmem [resolvable:$true] %s113
      %116 = dma.vmem_to_hbm [thread:$0]  %s114, 16, %s3, [#allocation8]
    $region25: #{tpu_custom_call.1} parent=1 // pred_fallthru
      _
    // Predicated region
    $region26: #{tpu_custom_call.1} parent=1 // pred_check
      _
    $region27: #{tpu_custom_call.1} parent=1 // pred_check_branch
      %118 = sbr.rel (0) target = $region29
    $region28: #{tpu_custom_call.1} parent=1 // pred_region
      %119 = dma.done [#allocation8], 16
    $region29: #{tpu_custom_call.1} parent=1 // pred_fallthru
      _
    %120 = vsyncpa [#allocation7], 1
    %121 = vsyncpa [#allocation8], 1

</llo_original>
